<compile_context>
chip_gen: v6e
topology: v6e:2x2x1
jax: 0.10.0
libtpu: 0.0.40
codegen_flags: <defaults>
</compile_context>

<pallas_src>
import functools

import jax
import jax.numpy as jnp
from jax.experimental import pallas as pl
from jax.experimental.pallas import tpu as pltpu

LN_EPS = 1e-5                 # torch.nn.LayerNorm default
MASK_VALUE = -10000.0         # Megatron masked-score fill value
COMPUTE_DTYPE = jnp.bfloat16


def _vmem_limit_bytes():
    """Generation-aware VMEM budget: ~75% of physical, capped at 100 MiB."""
    try:
        phys = pltpu.get_tpu_info().vmem_capacity_bytes
    except Exception:
        phys = 64 * 1024 * 1024
    return int(min(phys * 3 // 4, 100 * 1024 * 1024))


def _layernorm_f32(x, g, b):
    x = x.astype(jnp.float32)
    mu = jnp.mean(x, axis=-1, keepdims=True)
    var = jnp.mean(jnp.square(x - mu), axis=-1, keepdims=True)
    return (x - mu) * jax.lax.rsqrt(var + LN_EPS) * g.astype(jnp.float32) + b.astype(jnp.float32)


def _gelu_tanh_f32(x):
    # Megatron's gelu_impl (tanh approximation), f32 math
    return 0.5 * x * (1.0 + jnp.tanh(0.7978845608028654 * x * (1.0 + 0.044715 * x * x)))


# ---------------------------------------------------------------------------
# Kernel 1: LayerNorm1 + fused QKV projection, emitting head-major q/k/v.
# grid = (B, S // TS); outputs are (B, nh, S, dh).
# ---------------------------------------------------------------------------
def ln_qkv_kernel(x_ref, g_ref, b_ref, w_ref, bias_ref, q_ref, k_ref, v_ref, *, nh, dh):
    h_ln = _layernorm_f32(x_ref[0], g_ref[0], b_ref[0])           # (TS, H) f32
    w = w_ref[...]                                                 # (H, 3H) bf16
    qkv = (jnp.dot(h_ln.astype(w.dtype), w, preferred_element_type=jnp.float32)
           + bias_ref[0].astype(jnp.float32)).astype(q_ref.dtype)  # (TS, 3H)
    H = nh * dh

    def split(mat):                                                # (TS, H) -> (nh, TS, dh)
        return jnp.stack([mat[:, h * dh:(h + 1) * dh] for h in range(nh)], axis=0)

    q_ref[0] = split(qkv[:, 0:H])
    k_ref[0] = split(qkv[:, H:2 * H])
    v_ref[0] = split(qkv[:, 2 * H:3 * H])


# ---------------------------------------------------------------------------
# Kernel 2: flash-style attention over head-major q/k/v, in-kernel causal mask.
# grid = (B, S // TQ, S // TK); KV axis is 'arbitrary' with online softmax.
# Output is written lane-dense as (1, TQ, H).
# ---------------------------------------------------------------------------
def flash_attn_kernel(*refs, scale, causal, block_q, block_k):
    if causal:
        q_ref, k_ref, v_ref, o_ref, m_sc, l_sc, acc_sc = refs
        mask_ref = None
    else:
        q_ref, k_ref, v_ref, mask_ref, o_ref, m_sc, l_sc, acc_sc = refs
    qi = pl.program_id(1)
    ki = pl.program_id(2)

    @pl.when(ki == 0)
    def _():
        m_sc[...] = jnp.full_like(m_sc, -jnp.inf)
        l_sc[...] = jnp.zeros_like(l_sc)
        acc_sc[...] = jnp.zeros_like(acc_sc)

    def compute():
        q = q_ref[0]                                               # (nh, TQ, dh) bf16
        k = k_ref[0]                                               # (nh, TK, dh) bf16
        v = v_ref[0]                                               # (nh, TK, dh) bf16

        s = jnp.einsum('hqd,hkd->hqk', q, k,
                       preferred_element_type=jnp.float32) * scale  # (nh, TQ, TK) f32
        if causal:
            row = qi * block_q + jax.lax.broadcasted_iota(jnp.int32, (block_q, block_k), 0)
            col = ki * block_k + jax.lax.broadcasted_iota(jnp.int32, (block_q, block_k), 1)
            allowed = col <= row
        else:
            allowed = mask_ref[...] > 0.0                          # (TQ, TK)
        s = jnp.where(allowed[None, :, :], s, MASK_VALUE)

        m_prev = m_sc[...]                                         # (nh, TQ, 1)
        m_new = jnp.maximum(m_prev, jnp.max(s, axis=-1, keepdims=True))
        alpha = jnp.exp(m_prev - m_new)
        p = jnp.exp(s - m_new)                                     # (nh, TQ, TK) f32
        l_sc[...] = alpha * l_sc[...] + jnp.sum(p, axis=-1, keepdims=True)
        acc_sc[...] = alpha * acc_sc[...] + jnp.einsum(
            'hqk,hkd->hqd', p.astype(v.dtype), v, preferred_element_type=jnp.float32)
        m_sc[...] = m_new

    if causal:
        # skip KV tiles entirely in the masked future (ki=0 always computes)
        pl.when(ki * block_k <= qi * block_q + block_q - 1)(compute)
    else:
        compute()

    @pl.when(ki == pl.num_programs(2) - 1)
    def _():
        ctx = acc_sc[...] * pl.reciprocal(l_sc[...], approx=True)  # (nh, TQ, dh) f32
        nh = ctx.shape[0]
        merged = jnp.concatenate([ctx[h] for h in range(nh)], axis=-1)  # (TQ, H) lane-dense
        o_ref[0] = merged.astype(o_ref.dtype)


# ---------------------------------------------------------------------------
# Kernel 3: attention output projection + residual + LN2 + MLP + residual.
# grid = (B, S // TS)
# ---------------------------------------------------------------------------
def proj_mlp_kernel(ctx_ref, x_ref, proj_w_ref, proj_b_ref,
                    ln2_g_ref, ln2_b_ref, fc1_w_ref, fc1_b_ref,
                    fc2_w_ref, fc2_b_ref, o_ref):
    ctx = ctx_ref[0]                                               # (TS, H) bf16
    x = x_ref[0].astype(jnp.float32)                               # (TS, H) f32

    attn = jnp.dot(ctx, proj_w_ref[...],
                   preferred_element_type=jnp.float32) + proj_b_ref[0].astype(jnp.float32)
    h = x + attn                                                   # residual, f32

    h_ln = _layernorm_f32(h, ln2_g_ref[0], ln2_b_ref[0])
    w1 = fc1_w_ref[...]
    h1 = jnp.dot(h_ln.astype(w1.dtype), w1,
                 preferred_element_type=jnp.float32) + fc1_b_ref[0].astype(jnp.float32)
    h1 = _gelu_tanh_f32(h1)
    w2 = fc2_w_ref[...]
    h2 = jnp.dot(h1.astype(w2.dtype), w2,
                 preferred_element_type=jnp.float32) + fc2_b_ref[0].astype(jnp.float32)

    o_ref[0] = (h + h2).astype(o_ref.dtype)


# ---------------------------------------------------------------------------
# Kernel 4: final LayerNorm + logits = y @ word_emb.T, vocab-tiled.
# grid = (B, S // TS, Vp // TV), all axes 'parallel' (LN recomputed per tile).
# ---------------------------------------------------------------------------
def lnf_logits_kernel(x_ref, g_ref, b_ref, emb_ref, o_ref):
    y = _layernorm_f32(x_ref[0], g_ref[0], b_ref[0]).astype(emb_ref.dtype)  # (TS, H)
    # contract H of the (TV, H) tile directly (no materialized transpose)
    o_ref[0] = jax.lax.dot_general(
        y, emb_ref[...], dimension_numbers=(((1,), (1,)), ((), ())),
        preferred_element_type=jnp.float32).astype(o_ref.dtype)             # (TS, TV)


# ---------------------------------------------------------------------------
# Spec helpers
# ---------------------------------------------------------------------------
def _full_spec(a):
    # whole-array block, replicated across all grid axes
    return pl.BlockSpec(a.shape, lambda *args, _nd=a.ndim: (0,) * _nd)


def _weight_spec(a):
    # grid-invariant weight block: single-buffer it (double-buffering an
    # invariant operand only doubles its VMEM footprint)
    return pl.BlockSpec(a.shape, lambda *args, _nd=a.ndim: (0,) * _nd,
                        pipeline_mode=pl.Buffered(1))


def _pick_tile(dim, target, align):
    """Largest t <= target with dim % t == 0 and t % align == 0, else the full dim."""
    if dim <= target:
        return dim
    for t in range(target, align - 1, -1):
        if dim % t == 0 and t % align == 0:
            return t
    return dim


# ---------------------------------------------------------------------------
# Wrapper
# ---------------------------------------------------------------------------
def gpt2_forward(params, input_ids, position_ids, attention_mask=None, *,
                 causal=True, logits_dtype=jnp.float32):
    """Forward pass of GPT2Model with parallel_output=True (single partition).

    If causal=True (the standard GPT-2 ltor mask), the mask is generated
    in-kernel and `attention_mask` is ignored; otherwise `attention_mask`
    (broadcastable to [S, S], 1=keep / 0=mask) is streamed as bf16 tiles.
    """
    B, S = input_ids.shape
    V, H = params["word_emb"].shape
    nh = params["num_heads"]
    dh = H // nh

    # Embedding gathers (XLA glue); embedding dropout is identity (eval / p=0).
    x = (jnp.take(params["word_emb"], input_ids, axis=0).astype(jnp.float32)
         + jnp.take(params["pos_emb"], position_ids, axis=0).astype(jnp.float32)
         ).astype(COMPUTE_DTYPE)                                   # (B, S, H)

    TS = _pick_tile(S, 512, 8)                    # activation/S tile for dense kernels
    TQ = _pick_tile(S, 128, 8)                    # query tile (small: cuts score-tile pressure)
    TK = _pick_tile(S, 256, 8 if causal else 128)  # key/value tile

    vmem = _vmem_limit_bytes()
    cp2 = pltpu.CompilerParams(dimension_semantics=("parallel", "parallel"),
                               vmem_limit_bytes=vmem)
    cp_attn = pltpu.CompilerParams(dimension_semantics=("parallel", "parallel", "arbitrary"),
                                   vmem_limit_bytes=vmem)
    cp_logits = pltpu.CompilerParams(dimension_semantics=("parallel", "parallel", "parallel"),
                                     vmem_limit_bytes=vmem)

    act_spec = pl.BlockSpec((1, TS, H), lambda b, s: (b, s, 0))
    hm_shape = jax.ShapeDtypeStruct((B, nh, S, dh), COMPUTE_DTYPE)
    hm_out_spec = pl.BlockSpec((1, nh, TS, dh), lambda b, s: (b, 0, s, 0))

    # Clamp the KV block index to the last causally-needed block so that
    # fully-masked tiles do not trigger a new DMA (pipeline skips re-fetch of
    # an unchanged block index); their compute is skipped inside the kernel.
    def _kv_idx(qi, ki):
        return jnp.minimum(ki, (qi * TQ + TQ - 1) // TK)

    kv_pipe = pl.Buffered(3) if (S // TK) >= 4 else None
    q_spec = pl.BlockSpec((1, nh, TQ, dh), lambda b, qi, ki: (b, 0, qi, 0))
    if causal:
        kv_map = lambda b, qi, ki: (b, 0, _kv_idx(qi, ki), 0)
    else:
        kv_map = lambda b, qi, ki: (b, 0, ki, 0)
    k_spec = pl.BlockSpec((1, nh, TK, dh), kv_map, pipeline_mode=kv_pipe)
    v_spec = pl.BlockSpec((1, nh, TK, dh), kv_map, pipeline_mode=kv_pipe)

    flash_in_specs = [q_spec, k_spec, v_spec]
    if not causal:
        assert attention_mask is not None, "non-causal path needs an attention_mask"
        mask2d = attention_mask.reshape(S, S).astype(COMPUTE_DTYPE)
        flash_in_specs.append(pl.BlockSpec((TQ, TK), lambda b, qi, ki: (qi, ki)))

    for lp in params["layers"]:
        # ---- LN1 + fused QKV projection -> head-major q/k/v ----
        qh, kh, vh = pl.pallas_call(
            functools.partial(ln_qkv_kernel, nh=nh, dh=dh),
            grid=(B, S // TS),
            in_specs=[act_spec,
                      _full_spec(lp["ln1_g"]), _full_spec(lp["ln1_b"]),
                      _weight_spec(lp["qkv_w"]), _full_spec(lp["qkv_b"])],
            out_specs=(hm_out_spec, hm_out_spec, hm_out_spec),
            out_shape=(hm_shape, hm_shape, hm_shape),
            compiler_params=cp2,
        )(x, lp["ln1_g"], lp["ln1_b"], lp["qkv_w"], lp["qkv_b"])

        # ---- flash-style attention (lane-dense (B, S, H) output) ----
        flash_inputs = [qh, kh, vh] + ([] if causal else [mask2d])
        ctx = pl.pallas_call(
            functools.partial(flash_attn_kernel, scale=1.0 / (dh ** 0.5),
                              causal=causal, block_q=TQ, block_k=TK),
            grid=(B, S // TQ, S // TK),
            in_specs=flash_in_specs,
            out_specs=pl.BlockSpec((1, TQ, H), lambda b, qi, ki: (b, qi, 0)),
            out_shape=jax.ShapeDtypeStruct((B, S, H), COMPUTE_DTYPE),
            scratch_shapes=[pltpu.VMEM((nh, TQ, 1), jnp.float32),
                            pltpu.VMEM((nh, TQ, 1), jnp.float32),
                            pltpu.VMEM((nh, TQ, dh), jnp.float32)],
            compiler_params=cp_attn,
        )(*flash_inputs)

        # ---- output projection + residual + LN2 + MLP + residual ----
        x = pl.pallas_call(
            proj_mlp_kernel,
            grid=(B, S // TS),
            in_specs=[act_spec, act_spec,
                      _weight_spec(lp["proj_w"]), _full_spec(lp["proj_b"]),
                      _full_spec(lp["ln2_g"]), _full_spec(lp["ln2_b"]),
                      _weight_spec(lp["fc1_w"]), _full_spec(lp["fc1_b"]),
                      _weight_spec(lp["fc2_w"]), _full_spec(lp["fc2_b"])],
            out_specs=act_spec,
            out_shape=jax.ShapeDtypeStruct((B, S, H), COMPUTE_DTYPE),
            compiler_params=cp2,
        )(ctx, x, lp["proj_w"], lp["proj_b"], lp["ln2_g"], lp["ln2_b"],
          lp["fc1_w"], lp["fc1_b"], lp["fc2_w"], lp["fc2_b"])

    # ---- final LayerNorm + vocab-tiled logits (vocab padded to a tile multiple) ----
    TV_TARGET = 1024
    if V > TV_TARGET:
        TV = TV_TARGET
        Vp = -(-V // TV) * TV
    else:
        TV, Vp = V, V
    emb = params["word_emb"]
    if Vp != V:
        emb = jnp.pad(emb, ((0, Vp - V), (0, 0)))

    logits = pl.pallas_call(
        lnf_logits_kernel,
        grid=(B, S // TS, Vp // TV),
        in_specs=[pl.BlockSpec((1, TS, H), lambda b, si, vi: (b, si, 0)),
                  _full_spec(params["lnf_g"]), _full_spec(params["lnf_b"]),
                  pl.BlockSpec((TV, H), lambda b, si, vi: (vi, 0))],
        out_specs=pl.BlockSpec((1, TS, TV), lambda b, si, vi: (b, si, vi)),
        out_shape=jax.ShapeDtypeStruct((B, S, Vp), logits_dtype),
        compiler_params=cp_logits,
    )(x, params["lnf_g"], params["lnf_b"], emb)
    if Vp != V:
        logits = logits[:, :, :V]
    return logits


def init_params(key, num_layers, vocab_size, hidden_size, num_heads, max_seq):
    std = 0.02
    out_std = std / (2.0 * num_layers) ** 0.5  # Megatron scaled init for output linears
    keys = jax.random.split(key, 2 + num_layers)
    H = hidden_size
    wdt = COMPUTE_DTYPE
    params = {
        "num_heads": num_heads,
        "word_emb": (std * jax.random.normal(keys[0], (vocab_size, H), jnp.float32)).astype(wdt),
        "pos_emb": (std * jax.random.normal(keys[1], (max_seq, H), jnp.float32)).astype(wdt),
        "lnf_g": jnp.ones((1, H), jnp.float32),
        "lnf_b": jnp.zeros((1, H), jnp.float32),
        "layers": [],
    }
    for i in range(num_layers):
        k = jax.random.split(keys[2 + i], 4)
        params["layers"].append({
            "ln1_g": jnp.ones((1, H), jnp.float32),
            "ln1_b": jnp.zeros((1, H), jnp.float32),
            "qkv_w": (std * jax.random.normal(k[0], (H, 3 * H), jnp.float32)).astype(wdt),
            "qkv_b": jnp.zeros((1, 3 * H), jnp.float32),
            "proj_w": (out_std * jax.random.normal(k[1], (H, H), jnp.float32)).astype(wdt),
            "proj_b": jnp.zeros((1, H), jnp.float32),
            "ln2_g": jnp.ones((1, H), jnp.float32),
            "ln2_b": jnp.zeros((1, H), jnp.float32),
            "fc1_w": (std * jax.random.normal(k[2], (H, 4 * H), jnp.float32)).astype(wdt),
            "fc1_b": jnp.zeros((1, 4 * H), jnp.float32),
            "fc2_w": (out_std * jax.random.normal(k[3], (4 * H, H), jnp.float32)).astype(wdt),
            "fc2_b": jnp.zeros((1, H), jnp.float32),
        })
    return params


if __name__ == "__main__":
    # Small GPT-2 config: num_layers=2, vocab=64, hidden=32, heads=4, max_seq=16
    B, S, H, NH, V, L, MAXSEQ = 2, 8, 32, 4, 64, 2, 16

    key = jax.random.PRNGKey(0)
    k_params, k_ids = jax.random.split(key)
    params = init_params(k_params, L, V, H, NH, MAXSEQ)

    input_ids = jax.random.randint(k_ids, (B, S), 0, V)
    position_ids = jnp.broadcast_to(jnp.arange(S, dtype=jnp.int32), (B, S))
    # left-to-right (causal) mask, shape [1, 1, S, S] as Megatron expects
    # (causal=True -> the same mask is generated in-kernel; argument kept for API parity)
    attention_mask = jnp.tril(jnp.ones((1, 1, S, S), jnp.float32))

    logits = gpt2_forward(params, input_ids, position_ids, attention_mask, causal=True)
    jax.block_until_ready(logits)

    assert logits.shape == (B, S, V)
    assert bool(jnp.all(jnp.isfinite(logits)))
    print("KERNEL_OK")
</pallas_src>

<mosaic_0001>
module attributes {stable_mosaic.version = 11 : i64} {
  func.func @ln_qkv_kernel(%arg0: i32, %arg1: i32, %arg2: memref<1x8x32xbf16, #tpu.memory_space<vmem>>, %arg3: memref<1x32xf32, #tpu.memory_space<vmem>>, %arg4: memref<1x32xf32, #tpu.memory_space<vmem>>, %arg5: memref<32x96xbf16, #tpu.memory_space<vmem>>, %arg6: memref<1x96xf32, #tpu.memory_space<vmem>>, %arg7: memref<1x4x8x8xbf16, #tpu.memory_space<vmem>>, %arg8: memref<1x4x8x8xbf16, #tpu.memory_space<vmem>>, %arg9: memref<1x4x8x8xbf16, #tpu.memory_space<vmem>>) attributes {dimension_semantics = [#tpu.dimension_semantics<parallel>, #tpu.dimension_semantics<parallel>], iteration_bounds = array<i64: 2, 1>, scalar_prefetch = 0 : i64, scratch_operands = 0 : i64, tpu.core_type = #tpu.core_type<tc>, window_params = [{transform_indices = @transform_0, window_bounds = array<i64: 1, 8, 32>}, {pipeline_mode = #tpu.pipeline_mode<synchronous>, transform_indices = @transform_1, window_bounds = array<i64: 1, 32>}, {pipeline_mode = #tpu.pipeline_mode<synchronous>, transform_indices = @transform_2, window_bounds = array<i64: 1, 32>}, {pipeline_mode = #tpu.pipeline_mode<synchronous>, transform_indices = @transform_3, window_bounds = array<i64: 32, 96>}, {pipeline_mode = #tpu.pipeline_mode<synchronous>, transform_indices = @transform_4, window_bounds = array<i64: 1, 96>}, {transform_indices = @transform_5, window_bounds = array<i64: 1, 4, 8, 8>}, {transform_indices = @transform_6, window_bounds = array<i64: 1, 4, 8, 8>}, {transform_indices = @transform_7, window_bounds = array<i64: 1, 4, 8, 8>}]} {
    %c0 = arith.constant 0 : index
    %c0_0 = arith.constant 0 : index
    %c0_1 = arith.constant 0 : index
    %0 = vector.load %arg2[%c0, %c0_0, %c0_1] : memref<1x8x32xbf16, #tpu.memory_space<vmem>>, vector<1x8x32xbf16>
    %1 = vector.shape_cast %0 : vector<1x8x32xbf16> to vector<8x32xbf16>
    %c0_2 = arith.constant 0 : index
    %c0_3 = arith.constant 0 : index
    %2 = vector.load %arg3[%c0_2, %c0_3] : memref<1x32xf32, #tpu.memory_space<vmem>>, vector<1x32xf32>
    %3 = vector.shape_cast %2 : vector<1x32xf32> to vector<32xf32>
    %c0_4 = arith.constant 0 : index
    %c0_5 = arith.constant 0 : index
    %4 = vector.load %arg4[%c0_4, %c0_5] : memref<1x32xf32, #tpu.memory_space<vmem>>, vector<1x32xf32>
    %5 = vector.shape_cast %4 : vector<1x32xf32> to vector<32xf32>
    %6 = arith.extf %1 : vector<8x32xbf16> to vector<8x32xf32>
    %cst = arith.constant dense<0.000000e+00> : vector<8xf32>
    %7 = vector.multi_reduction <add>, %6, %cst [1] : vector<8x32xf32> to vector<8xf32>
    %8 = vector.shape_cast %7 : vector<8xf32> to vector<8x1xf32>
    %cst_6 = arith.constant 3.200000e+01 : f32
    %9 = vector.broadcast %cst_6 : f32 to vector<8x1xf32>
    %10 = arith.divf %8, %9 : vector<8x1xf32>
    %11 = vector.broadcast %10 : vector<8x1xf32> to vector<8x32xf32>
    %12 = arith.subf %6, %11 : vector<8x32xf32>
    %13 = arith.mulf %12, %12 : vector<8x32xf32>
    %cst_7 = arith.constant dense<0.000000e+00> : vector<8xf32>
    %14 = vector.multi_reduction <add>, %13, %cst_7 [1] : vector<8x32xf32> to vector<8xf32>
    %15 = vector.shape_cast %14 : vector<8xf32> to vector<8x1xf32>
    %cst_8 = arith.constant 3.200000e+01 : f32
    %16 = vector.broadcast %cst_8 : f32 to vector<8x1xf32>
    %17 = arith.divf %15, %16 : vector<8x1xf32>
    %18 = vector.broadcast %10 : vector<8x1xf32> to vector<8x32xf32>
    %19 = arith.subf %6, %18 : vector<8x32xf32>
    %cst_9 = arith.constant 9.99999974E-6 : f32
    %20 = vector.broadcast %cst_9 : f32 to vector<8x1xf32>
    %21 = arith.addf %17, %20 : vector<8x1xf32>
    %22 = math.rsqrt %21 : vector<8x1xf32>
    %23 = vector.broadcast %22 : vector<8x1xf32> to vector<8x32xf32>
    %24 = arith.mulf %19, %23 : vector<8x32xf32>
    %25 = vector.shape_cast %3 : vector<32xf32> to vector<1x32xf32>
    %26 = vector.broadcast %25 : vector<1x32xf32> to vector<8x32xf32>
    %27 = arith.mulf %24, %26 : vector<8x32xf32>
    %28 = vector.shape_cast %5 : vector<32xf32> to vector<1x32xf32>
    %29 = vector.broadcast %28 : vector<1x32xf32> to vector<8x32xf32>
    %30 = arith.addf %27, %29 : vector<8x32xf32>
    %c0_10 = arith.constant 0 : index
    %c0_11 = arith.constant 0 : index
    %31 = vector.load %arg5[%c0_10, %c0_11] : memref<32x96xbf16, #tpu.memory_space<vmem>>, vector<32x96xbf16>
    %32 = arith.truncf %30 : vector<8x32xf32> to vector<8x32xbf16>
    %cst_12 = arith.constant dense<0.000000e+00> : vector<8x96xf32>
    %33 = tpu.matmul %32, %31, %cst_12 {dimension_numbers = #tpu.dot_dimension_numbers<[1], [0], [0], [1], [0, 0, 1, 1], [], []>} : vector<8x32xbf16>, vector<32x96xbf16>, vector<8x96xf32> -> vector<8x96xf32>
    %c0_13 = arith.constant 0 : index
    %c0_14 = arith.constant 0 : index
    %34 = vector.load %arg6[%c0_13, %c0_14] : memref<1x96xf32, #tpu.memory_space<vmem>>, vector<1x96xf32>
    %35 = vector.shape_cast %34 : vector<1x96xf32> to vector<96xf32>
    %36 = vector.shape_cast %35 : vector<96xf32> to vector<1x96xf32>
    %37 = vector.broadcast %36 : vector<1x96xf32> to vector<8x96xf32>
    %38 = arith.addf %33, %37 : vector<8x96xf32>
    %39 = arith.truncf %38 : vector<8x96xf32> to vector<8x96xbf16>
    %40 = vector.extract_strided_slice %39 {offsets = [0, 0], sizes = [8, 32], strides = [1, 1]} : vector<8x96xbf16> to vector<8x32xbf16>
    %41 = vector.extract_strided_slice %40 {offsets = [0, 0], sizes = [8, 8], strides = [1, 1]} : vector<8x32xbf16> to vector<8x8xbf16>
    %42 = vector.extract_strided_slice %40 {offsets = [0, 8], sizes = [8, 8], strides = [1, 1]} : vector<8x32xbf16> to vector<8x8xbf16>
    %43 = vector.extract_strided_slice %40 {offsets = [0, 16], sizes = [8, 8], strides = [1, 1]} : vector<8x32xbf16> to vector<8x8xbf16>
    %44 = vector.extract_strided_slice %40 {offsets = [0, 24], sizes = [8, 8], strides = [1, 1]} : vector<8x32xbf16> to vector<8x8xbf16>
    %45 = vector.shape_cast %41 : vector<8x8xbf16> to vector<1x8x8xbf16>
    %46 = vector.shape_cast %42 : vector<8x8xbf16> to vector<1x8x8xbf16>
    %47 = vector.shape_cast %43 : vector<8x8xbf16> to vector<1x8x8xbf16>
    %48 = vector.shape_cast %44 : vector<8x8xbf16> to vector<1x8x8xbf16>
    %49 = tpu.concatenate %45, %46, %47, %48 in 0 : vector<1x8x8xbf16>, vector<1x8x8xbf16>, vector<1x8x8xbf16>, vector<1x8x8xbf16> -> vector<4x8x8xbf16>
    %c0_15 = arith.constant 0 : index
    %c0_16 = arith.constant 0 : index
    %c0_17 = arith.constant 0 : index
    %c0_18 = arith.constant 0 : index
    %50 = vector.load %arg7[%c0_15, %c0_16, %c0_17, %c0_18] : memref<1x4x8x8xbf16, #tpu.memory_space<vmem>>, vector<1x4x8x8xbf16>
    %51 = vector.shape_cast %50 : vector<1x4x8x8xbf16> to vector<4x8x8xbf16>
    %52 = vector.shape_cast %49 : vector<4x8x8xbf16> to vector<1x4x8x8xbf16>
    tpu.vector_store %arg7[%c0_15, %c0_16, %c0_17, %c0_18], %52 {strides = array<i32>} : memref<1x4x8x8xbf16, #tpu.memory_space<vmem>>, vector<1x4x8x8xbf16>,
    %53 = vector.extract_strided_slice %39 {offsets = [0, 32], sizes = [8, 32], strides = [1, 1]} : vector<8x96xbf16> to vector<8x32xbf16>
    %54 = vector.extract_strided_slice %53 {offsets = [0, 0], sizes = [8, 8], strides = [1, 1]} : vector<8x32xbf16> to vector<8x8xbf16>
    %55 = vector.extract_strided_slice %53 {offsets = [0, 8], sizes = [8, 8], strides = [1, 1]} : vector<8x32xbf16> to vector<8x8xbf16>
    %56 = vector.extract_strided_slice %53 {offsets = [0, 16], sizes = [8, 8], strides = [1, 1]} : vector<8x32xbf16> to vector<8x8xbf16>
    %57 = vector.extract_strided_slice %53 {offsets = [0, 24], sizes = [8, 8], strides = [1, 1]} : vector<8x32xbf16> to vector<8x8xbf16>
    %58 = vector.shape_cast %54 : vector<8x8xbf16> to vector<1x8x8xbf16>
    %59 = vector.shape_cast %55 : vector<8x8xbf16> to vector<1x8x8xbf16>
    %60 = vector.shape_cast %56 : vector<8x8xbf16> to vector<1x8x8xbf16>
    %61 = vector.shape_cast %57 : vector<8x8xbf16> to vector<1x8x8xbf16>
    %62 = tpu.concatenate %58, %59, %60, %61 in 0 : vector<1x8x8xbf16>, vector<1x8x8xbf16>, vector<1x8x8xbf16>, vector<1x8x8xbf16> -> vector<4x8x8xbf16>
    %c0_19 = arith.constant 0 : index
    %c0_20 = arith.constant 0 : index
    %c0_21 = arith.constant 0 : index
    %c0_22 = arith.constant 0 : index
    %63 = vector.load %arg8[%c0_19, %c0_20, %c0_21, %c0_22] : memref<1x4x8x8xbf16, #tpu.memory_space<vmem>>, vector<1x4x8x8xbf16>
    %64 = vector.shape_cast %63 : vector<1x4x8x8xbf16> to vector<4x8x8xbf16>
    %65 = vector.shape_cast %62 : vector<4x8x8xbf16> to vector<1x4x8x8xbf16>
    tpu.vector_store %arg8[%c0_19, %c0_20, %c0_21, %c0_22], %65 {strides = array<i32>} : memref<1x4x8x8xbf16, #tpu.memory_space<vmem>>, vector<1x4x8x8xbf16>,
    %66 = vector.extract_strided_slice %39 {offsets = [0, 64], sizes = [8, 32], strides = [1, 1]} : vector<8x96xbf16> to vector<8x32xbf16>
    %67 = vector.extract_strided_slice %66 {offsets = [0, 0], sizes = [8, 8], strides = [1, 1]} : vector<8x32xbf16> to vector<8x8xbf16>
    %68 = vector.extract_strided_slice %66 {offsets = [0, 8], sizes = [8, 8], strides = [1, 1]} : vector<8x32xbf16> to vector<8x8xbf16>
    %69 = vector.extract_strided_slice %66 {offsets = [0, 16], sizes = [8, 8], strides = [1, 1]} : vector<8x32xbf16> to vector<8x8xbf16>
    %70 = vector.extract_strided_slice %66 {offsets = [0, 24], sizes = [8, 8], strides = [1, 1]} : vector<8x32xbf16> to vector<8x8xbf16>
    %71 = vector.shape_cast %67 : vector<8x8xbf16> to vector<1x8x8xbf16>
    %72 = vector.shape_cast %68 : vector<8x8xbf16> to vector<1x8x8xbf16>
    %73 = vector.shape_cast %69 : vector<8x8xbf16> to vector<1x8x8xbf16>
    %74 = vector.shape_cast %70 : vector<8x8xbf16> to vector<1x8x8xbf16>
    %75 = tpu.concatenate %71, %72, %73, %74 in 0 : vector<1x8x8xbf16>, vector<1x8x8xbf16>, vector<1x8x8xbf16>, vector<1x8x8xbf16> -> vector<4x8x8xbf16>
    %c0_23 = arith.constant 0 : index
    %c0_24 = arith.constant 0 : index
    %c0_25 = arith.constant 0 : index
    %c0_26 = arith.constant 0 : index
    %76 = vector.load %arg9[%c0_23, %c0_24, %c0_25, %c0_26] : memref<1x4x8x8xbf16, #tpu.memory_space<vmem>>, vector<1x4x8x8xbf16>
    %77 = vector.shape_cast %76 : vector<1x4x8x8xbf16> to vector<4x8x8xbf16>
    %78 = vector.shape_cast %75 : vector<4x8x8xbf16> to vector<1x4x8x8xbf16>
    tpu.vector_store %arg9[%c0_23, %c0_24, %c0_25, %c0_26], %78 {strides = array<i32>} : memref<1x4x8x8xbf16, #tpu.memory_space<vmem>>, vector<1x4x8x8xbf16>,
    return
  }
  func.func @transform_0(%arg0: i32, %arg1: i32) -> (i32, i32, i32) {
    %c0_i32 = arith.constant 0 : i32
    %c0_i32_0 = arith.constant 0 : i32
    return %arg0, %arg1, %c0_i32 : i32, i32, i32
  }
  func.func @transform_1(%arg0: i32, %arg1: i32) -> (i32, i32) {
    %c0_i32 = arith.constant 0 : i32
    %c0_i32_0 = arith.constant 0 : i32
    %c0_i32_1 = arith.constant 0 : i32
    return %c0_i32, %c0_i32_0 : i32, i32
  }
  func.func @transform_2(%arg0: i32, %arg1: i32) -> (i32, i32) {
    %c0_i32 = arith.constant 0 : i32
    %c0_i32_0 = arith.constant 0 : i32
    %c0_i32_1 = arith.constant 0 : i32
    return %c0_i32, %c0_i32_0 : i32, i32
  }
  func.func @transform_3(%arg0: i32, %arg1: i32) -> (i32, i32) {
    %c0_i32 = arith.constant 0 : i32
    %c0_i32_0 = arith.constant 0 : i32
    %c0_i32_1 = arith.constant 0 : i32
    return %c0_i32, %c0_i32_0 : i32, i32
  }
  func.func @transform_4(%arg0: i32, %arg1: i32) -> (i32, i32) {
    %c0_i32 = arith.constant 0 : i32
    %c0_i32_0 = arith.constant 0 : i32
    %c0_i32_1 = arith.constant 0 : i32
    return %c0_i32, %c0_i32_0 : i32, i32
  }
  func.func @transform_5(%arg0: i32, %arg1: i32) -> (i32, i32, i32, i32) {
    %c0_i32 = arith.constant 0 : i32
    %c0_i32_0 = arith.constant 0 : i32
    %c0_i32_1 = arith.constant 0 : i32
    return %arg0, %c0_i32, %arg1, %c0_i32_0 : i32, i32, i32, i32
  }
  func.func @transform_6(%arg0: i32, %arg1: i32) -> (i32, i32, i32, i32) {
    %c0_i32 = arith.constant 0 : i32
    %c0_i32_0 = arith.constant 0 : i32
    %c0_i32_1 = arith.constant 0 : i32
    return %arg0, %c0_i32, %arg1, %c0_i32_0 : i32, i32, i32, i32
  }
  func.func @transform_7(%arg0: i32, %arg1: i32) -> (i32, i32, i32, i32) {
    %c0_i32 = arith.constant 0 : i32
    %c0_i32_0 = arith.constant 0 : i32
    %c0_i32_1 = arith.constant 0 : i32
    return %arg0, %c0_i32, %arg1, %c0_i32_0 : i32, i32, i32, i32
  }
}

</mosaic_0001>

<llo_original>
// kernel: tpu_custom_call.1
$region0: #{tpu_custom_call.1}
  #allocation0 [shape = 'u32[]', space=smem, size = 0x4, offset = 0x4, fixed_abs, tag = 'smem constant byte address 0x4 - core index']
  #allocation1 [shape = 'u32[144,128]{1,0:T(1,128)}', space=vmem, size = 0x12000, scoped, tag = 'internal scratch']
  %s0 = inlined_call_operand.hbm [shape: bf16[2,8,32], index: 0, kind: input, shape index: {}]
  %s1 = inlined_call_operand.vmem [shape: f32[1,32], index: 1, kind: input, shape index: {}]
  %s2 = inlined_call_operand.vmem [shape: f32[1,32], index: 2, kind: input, shape index: {}]
  %s3 = inlined_call_operand.hbm [shape: bf16[32,96], index: 3, kind: input, shape index: {}]
  %s4 = inlined_call_operand.vmem [shape: f32[1,96], index: 4, kind: input, shape index: {}]
  %s5 = inlined_call_operand.hbm [shape: bf16[2,4,8,8], index: 5, kind: output, shape index: {0}]
  %s6 = inlined_call_operand.hbm [shape: bf16[2,4,8,8], index: 6, kind: output, shape index: {1}]
  %s7 = inlined_call_operand.hbm [shape: bf16[2,4,8,8], index: 7, kind: output, shape index: {2}]
  %8 = xla_tuple %s5, %s6, %s7
  %s9 = sld [smem:[#allocation0]]
  $region77: #{tpu_custom_call.1} parent=0
    _
  %s11 = ssub.s32 1, %s9
  %s12 = scalar_select 0, %s11, %s9
  $region1: #{tpu_custom_call.1} parent=0
    #allocation2 [shape = 'u8[4096]{0}', space=vmem, size = 0x1000, scoped, tag = 'input window, operand 0']
    #allocation3 [shape = 's32[2]{0}', space=sflag, size = 0x8, scoped, tag = 'scoped memory for tpu_custom_call.1']
    #allocation4 [shape = 's32[2]{0}', space=sflag, size = 0x8, scoped, tag = 'scoped memory for tpu_custom_call.1']
    #allocation5 [shape = 'u8[8192]{0}', space=vmem, size = 0x2000, scoped, tag = 'input window, operand 3, single buffered']
    #allocation6 [shape = 's32[1]{0}', space=sflag, size = 0x4, scoped, tag = 'scoped memory for tpu_custom_call.1']
    #allocation7 [shape = 'u8[16384]{0}', space=vmem, size = 0x4000, scoped, tag = 'output window, operand 0']
    #allocation8 [shape = 'u8[16384]{0}', space=vmem, size = 0x4000, scoped, tag = 'output window, operand 1']
    #allocation9 [shape = 's32[2]{0}', space=sflag, size = 0x8, scoped, tag = 'scoped memory for tpu_custom_call.1']
    #allocation10 [shape = 'u8[16384]{0}', space=vmem, size = 0x4000, scoped, tag = 'output window, operand 2']
    %13 = vsyncpa [#allocation3], 0
    %s14 = scalar_lea.sflag [#allocation3], 1
    %15 = vsyncpa %s14, 0
    %16 = vsyncpa [#allocation6], 0
    %17 = vsyncpa [#allocation4], 0
    %s18 = scalar_lea.sflag [#allocation4], 1
    %19 = vsyncpa %s18, 0
    %20 = vsyncpa [#allocation9], 0
    %s21 = scalar_lea.sflag [#allocation9], 1
    %22 = vsyncpa %s21, 0
    loop: start=0, step=1, limit=4
    $region2: #{tpu_custom_call.1} parent=1 // loop_pre_header
      _
    $region3: #{tpu_custom_call.1} parent=1 // loop_header
      %s24 = sphi 0, %s28
      %p25 = scmp.ge.s32.totalorder %s24, 4
      %s31 = sphi 0, %s43
      %s32 = sphi 0, %s39
      %s33 = sphi 0, %s31
      %s34 = sphi 0, %s32
      %s35 = sphi 0, %s33
      %s36 = sphi 0, %s34
      %s48 = sphi 0, %s50
      %s51 = sphi 0, %s48
      %s52 = sphi 0, %s51
      %s68 = sphi 0, %s52
      %s72 = sphi 0, %s72
      %s74 = sphi 0, %s72
      %s75 = sphi 0, %s74
      %s89 = sphi 0, %s75
      %s93 = sphi 0, %s93
      %s95 = sphi 0, %s93
      %s96 = sphi 0, %s95
      %s110 = sphi 0, %s96
      %s114 = sphi 0, %s114
      %s116 = sphi 0, %s114
      %s117 = sphi 0, %s116
      %s131 = sphi 0, %s117
      %s135 = sphi 0, %s135
      %s137 = sphi 0, %s135
      %s138 = sphi 0, %s137
      %s152 = sphi 0, %s138
      %s160 = sphi 0, %s162
      %s163 = sphi 0, %s160
      %s164 = sphi 0, %s163
      %s180 = sphi 0, %s164
      %s188 = sphi 0, %s190
      %s191 = sphi 0, %s188
      %s192 = sphi 0, %s191
      %s208 = sphi 0, %s192
      %s216 = sphi 0, %s218
      %s219 = sphi 0, %s216
      %s220 = sphi 0, %s219
      %s236 = sphi 0, %s220
    $region4: #{tpu_custom_call.1} parent=1 // loop_header_branch
      %27 = sbr.rel (%p25) target = $region8
    $region5: #{tpu_custom_call.1} parent=1 // loop_body
      %s29 = ssub.s32 %s24, 1
      %s30 = ssub.s32 %s24, 2
      %s37 = sadd.s32 1, %s32
      %p38 = scmp.ge.s32.totalorder %s37, 1
      %s39 = scalar_select %p38, 0, %s37
      %s40 = sadd.s32 1, %s31
      %s41 = scalar_select %p38, %s40, %s31
      %p42 = scmp.ge.s32.totalorder %s41, 2
      %s43 = scalar_select %p42, 0, %s41
      %s44 = ssub.s32 %s31, %s43
      %s45 = ssub.s32 %s32, %s39
      %s46 = sor.u32 %s44, %s45
      %p47 = scmp.eq.s32.totalorder %s46, 0
      %s49 = sadd.s32 %s48, 1
      %s50 = scalar_select %p47, %s48, %s49
      %p53 = pneg %p47
      %p54 = scmp.eq.s32.totalorder %s24, 1
      %p55 = por %p53, %p54
      %p56 = scmp.ne.s32.totalorder %s48, %s51
      %p57 = scmp.eq.s32.totalorder %s24, 0
      %p58 = por %p56, %p57
      %p59 = scmp.ne.s32.totalorder %s48, %s51
      %p60 = scmp.eq.s32.totalorder %s29, 1
      %p61 = por %p59, %p60
      %p62 = scmp.ne.s32.totalorder %s51, %s52
      %p63 = scmp.eq.s32.totalorder %s29, 0
      %p64 = por %p62, %p63
      %p65 = scmp.ne.s32.totalorder %s51, %s52
      %p66 = scmp.eq.s32.totalorder %s30, 1
      %p67 = por %p65, %p66
      %p69 = scmp.ne.s32.totalorder %s52, %s68
      %p70 = scmp.eq.s32.totalorder %s30, 0
      %p71 = por %p69, %p70
      %s73 = sadd.s32 %s72, 1
      %p76 = scmp.eq.s32.totalorder %s24, 1
      %p77 = scmp.ne.s32.totalorder %s72, %s74
      %p78 = scmp.eq.s32.totalorder %s24, 0
      %p79 = por %p77, %p78
      %p80 = scmp.ne.s32.totalorder %s72, %s74
      %p81 = scmp.eq.s32.totalorder %s29, 1
      %p82 = por %p80, %p81
      %p83 = scmp.ne.s32.totalorder %s74, %s75
      %p84 = scmp.eq.s32.totalorder %s29, 0
      %p85 = por %p83, %p84
      %p86 = scmp.ne.s32.totalorder %s74, %s75
      %p87 = scmp.eq.s32.totalorder %s30, 1
      %p88 = por %p86, %p87
      %p90 = scmp.ne.s32.totalorder %s75, %s89
      %p91 = scmp.eq.s32.totalorder %s30, 0
      %p92 = por %p90, %p91
      %s94 = sadd.s32 %s93, 1
      %p97 = scmp.eq.s32.totalorder %s24, 1
      %p98 = scmp.ne.s32.totalorder %s93, %s95
      %p99 = scmp.eq.s32.totalorder %s24, 0
      %p100 = por %p98, %p99
      %p101 = scmp.ne.s32.totalorder %s93, %s95
      %p102 = scmp.eq.s32.totalorder %s29, 1
      %p103 = por %p101, %p102
      %p104 = scmp.ne.s32.totalorder %s95, %s96
      %p105 = scmp.eq.s32.totalorder %s29, 0
      %p106 = por %p104, %p105
      %p107 = scmp.ne.s32.totalorder %s95, %s96
      %p108 = scmp.eq.s32.totalorder %s30, 1
      %p109 = por %p107, %p108
      %p111 = scmp.ne.s32.totalorder %s96, %s110
      %p112 = scmp.eq.s32.totalorder %s30, 0
      %p113 = por %p111, %p112
      %s115 = sadd.s32 %s114, 1
      %p118 = scmp.eq.s32.totalorder %s24, 1
      %p119 = scmp.ne.s32.totalorder %s114, %s116
      %p120 = scmp.eq.s32.totalorder %s24, 0
      %p121 = por %p119, %p120
      %p122 = scmp.ne.s32.totalorder %s114, %s116
      %p123 = scmp.eq.s32.totalorder %s29, 1
      %p124 = por %p122, %p123
      %p125 = scmp.ne.s32.totalorder %s116, %s117
      %p126 = scmp.eq.s32.totalorder %s29, 0
      %p127 = por %p125, %p126
      %p128 = scmp.ne.s32.totalorder %s116, %s117
      %p129 = scmp.eq.s32.totalorder %s30, 1
      %p130 = por %p128, %p129
      %p132 = scmp.ne.s32.totalorder %s117, %s131
      %p133 = scmp.eq.s32.totalorder %s30, 0
      %p134 = por %p132, %p133
      %s136 = sadd.s32 %s135, 1
      %p139 = scmp.eq.s32.totalorder %s24, 1
      %p140 = scmp.ne.s32.totalorder %s135, %s137
      %p141 = scmp.eq.s32.totalorder %s24, 0
      %p142 = por %p140, %p141
      %p143 = scmp.ne.s32.totalorder %s135, %s137
      %p144 = scmp.eq.s32.totalorder %s29, 1
      %p145 = por %p143, %p144
      %p146 = scmp.ne.s32.totalorder %s137, %s138
      %p147 = scmp.eq.s32.totalorder %s29, 0
      %p148 = por %p146, %p147
      %p149 = scmp.ne.s32.totalorder %s137, %s138
      %p150 = scmp.eq.s32.totalorder %s30, 1
      %p151 = por %p149, %p150
      %p153 = scmp.ne.s32.totalorder %s138, %s152
      %p154 = scmp.eq.s32.totalorder %s30, 0
      %p155 = por %p153, %p154
      %s156 = ssub.s32 %s31, %s43
      %s157 = ssub.s32 %s32, %s39
      %s158 = sor.u32 %s156, %s157
      %p159 = scmp.eq.s32.totalorder %s158, 0
      %s161 = sadd.s32 %s160, 1
      %s162 = scalar_select %p159, %s160, %s161
      %p165 = pneg %p159
      %p166 = scmp.eq.s32.totalorder %s24, 1
      %p167 = por %p165, %p166
      %p168 = scmp.ne.s32.totalorder %s160, %s163
      %p169 = scmp.eq.s32.totalorder %s24, 0
      %p170 = por %p168, %p169
      %p171 = scmp.ne.s32.totalorder %s160, %s163
      %p172 = scmp.eq.s32.totalorder %s29, 1
      %p173 = por %p171, %p172
      %p174 = scmp.ne.s32.totalorder %s163, %s164
      %p175 = scmp.eq.s32.totalorder %s29, 0
      %p176 = por %p174, %p175
      %p177 = scmp.ne.s32.totalorder %s163, %s164
      %p178 = scmp.eq.s32.totalorder %s30, 1
      %p179 = por %p177, %p178
      %p181 = scmp.ne.s32.totalorder %s164, %s180
      %p182 = scmp.eq.s32.totalorder %s30, 0
      %p183 = por %p181, %p182
      %s184 = ssub.s32 %s31, %s43
      %s185 = ssub.s32 %s32, %s39
      %s186 = sor.u32 %s184, %s185
      %p187 = scmp.eq.s32.totalorder %s186, 0
      %s189 = sadd.s32 %s188, 1
      %s190 = scalar_select %p187, %s188, %s189
      %p193 = pneg %p187
      %p194 = scmp.eq.s32.totalorder %s24, 1
      %p195 = por %p193, %p194
      %p196 = scmp.ne.s32.totalorder %s188, %s191
      %p197 = scmp.eq.s32.totalorder %s24, 0
      %p198 = por %p196, %p197
      %p199 = scmp.ne.s32.totalorder %s188, %s191
      %p200 = scmp.eq.s32.totalorder %s29, 1
      %p201 = por %p199, %p200
      %p202 = scmp.ne.s32.totalorder %s191, %s192
      %p203 = scmp.eq.s32.totalorder %s29, 0
      %p204 = por %p202, %p203
      %p205 = scmp.ne.s32.totalorder %s191, %s192
      %p206 = scmp.eq.s32.totalorder %s30, 1
      %p207 = por %p205, %p206
      %p209 = scmp.ne.s32.totalorder %s192, %s208
      %p210 = scmp.eq.s32.totalorder %s30, 0
      %p211 = por %p209, %p210
      %s212 = ssub.s32 %s31, %s43
      %s213 = ssub.s32 %s32, %s39
      %s214 = sor.u32 %s212, %s213
      %p215 = scmp.eq.s32.totalorder %s214, 0
      %s217 = sadd.s32 %s216, 1
      %s218 = scalar_select %p215, %s216, %s217
      %p221 = pneg %p215
      %p222 = scmp.eq.s32.totalorder %s24, 1
      %p223 = por %p221, %p222
      %p224 = scmp.ne.s32.totalorder %s216, %s219
      %p225 = scmp.eq.s32.totalorder %s24, 0
      %p226 = por %p224, %p225
      %p227 = scmp.ne.s32.totalorder %s216, %s219
      %p228 = scmp.eq.s32.totalorder %s29, 1
      %p229 = por %p227, %p228
      %p230 = scmp.ne.s32.totalorder %s219, %s220
      %p231 = scmp.eq.s32.totalorder %s29, 0
      %p232 = por %p230, %p231
      %p233 = scmp.ne.s32.totalorder %s219, %s220
      %p234 = scmp.eq.s32.totalorder %s30, 1
      %p235 = por %p233, %p234
      %p237 = scmp.ne.s32.totalorder %s220, %s236
      %p238 = scmp.eq.s32.totalorder %s30, 0
      %p239 = por %p237, %p238
      %p240 = scmp.le.s32.totalorder 1, %s24
      %p241 = scmp.lt.s32.totalorder %s24, 3
      %p242 = pnand %p240, %p241
      %p243 = pneg %p242
      // Predicated region
      $region9: #{tpu_custom_call.1} parent=5 // pred_check
        _
      $region10: #{tpu_custom_call.1} parent=5 // pred_check_branch
        %245 = sbr.rel (%p242) target = $region12
      $region11: #{tpu_custom_call.1} parent=5 // pred_region
        %s246 = ssub.s32 %s24, 1
        // Predicated region
        $region13: #{tpu_custom_call.1} parent=11 // pred_check
          %p247 = pneg %p85
        $region14: #{tpu_custom_call.1} parent=11 // pred_check_branch
          %249 = sbr.rel (%p247) target = $region16
        $region15: #{tpu_custom_call.1} parent=11 // pred_region
          _
        $region16: #{tpu_custom_call.1} parent=11 // pred_fallthru
          _
        // Predicated region
        $region17: #{tpu_custom_call.1} parent=11 // pred_check
          %p250 = pneg %p106
        $region18: #{tpu_custom_call.1} parent=11 // pred_check_branch
          %252 = sbr.rel (%p250) target = $region20
        $region19: #{tpu_custom_call.1} parent=11 // pred_region
          _
        $region20: #{tpu_custom_call.1} parent=11 // pred_fallthru
          _
        // Predicated region
        $region21: #{tpu_custom_call.1} parent=11 // pred_check
          %p253 = pneg %p127
        $region22: #{tpu_custom_call.1} parent=11 // pred_check_branch
          %255 = sbr.rel (%p253) target = $region24
        $region23: #{tpu_custom_call.1} parent=11 // pred_region
          %s257 = ssub.s32 256, 256
          %258 = vsyncadd [#allocation6], %s257
          %s259 = sshll.u32 [#allocation5], 4
          %s260 = int_to_ptr.vmem [resolvable:$true] %s259
          %265 = dma.hbm_to_vmem [thread:$0]  %s3, 256, %s260, [#allocation6], 64, 64, 4
        $region24: #{tpu_custom_call.1} parent=11 // pred_fallthru
          _
        // Predicated region
        $region25: #{tpu_custom_call.1} parent=11 // pred_check
          %p266 = pneg %p148
        $region26: #{tpu_custom_call.1} parent=11 // pred_check_branch
          %268 = sbr.rel (%p266) target = $region28
        $region27: #{tpu_custom_call.1} parent=11 // pred_region
          _
        $region28: #{tpu_custom_call.1} parent=11 // pred_fallthru
          _
      $region12: #{tpu_custom_call.1} parent=5 // pred_fallthru
        _
      %p269 = scmp.lt.s32.totalorder %s24, 2
      // Predicated region
      $region29: #{tpu_custom_call.1} parent=5 // pred_check
        %p270 = pneg %p269
      $region30: #{tpu_custom_call.1} parent=5 // pred_check_branch
        %272 = sbr.rel (%p270) target = $region32
      $region31: #{tpu_custom_call.1} parent=5 // pred_region
        // Predicated region
        $region33: #{tpu_custom_call.1} parent=31 // pred_check
          %p273 = pneg %p58
        $region34: #{tpu_custom_call.1} parent=31 // pred_check_branch
          %275 = sbr.rel (%p273) target = $region36
        $region35: #{tpu_custom_call.1} parent=31 // pred_region
          %s276 = sand.u32 %s48, 1
          %s277 = scalar_lea.sflag [#allocation3], %s276
          %s278 = sand.u32 %s48, 1
          %s279 = smul.addr %s278, 4
          %s280 = scalar_lea.vmem [#allocation2], %s279
          %s282 = ssub.s32 64, 64
          %283 = vsyncadd %s277, %s282
          %s284 = sadd.s32 %s32, %s31
          %s285 = smul.addr %s284, 64
          %s286 = scalar_lea.hbm %s0, %s285
          %s288 = sshll.u32 %s280, 4
          %s289 = int_to_ptr.vmem [resolvable:$true] %s288
          %291 = dma.hbm_to_vmem [thread:$0]  %s286, 64, %s289, %s277
        $region36: #{tpu_custom_call.1} parent=31 // pred_fallthru
          _
      $region32: #{tpu_custom_call.1} parent=5 // pred_fallthru
        _
      %p292 = scmp.le.s32.totalorder 1, %s24
      %p293 = scmp.lt.s32.totalorder %s24, 3
      %p294 = pnand %p292, %p293
      %p295 = pneg %p294
      // Predicated region
      $region37: #{tpu_custom_call.1} parent=5 // pred_check
        _
      $region38: #{tpu_custom_call.1} parent=5 // pred_check_branch
        %297 = sbr.rel (%p294) target = $region40
      $region39: #{tpu_custom_call.1} parent=5 // pred_region
        %s298 = ssub.s32 %s24, 1
        %s299 = sand.u32 %s51, 1
        %s300 = scalar_lea.sflag [#allocation3], %s299
        %s301 = sand.u32 %s51, 1
        %s302 = smul.addr %s301, 4
        %s303 = scalar_lea.vmem [#allocation2], %s302
        // Predicated region
        $region41: #{tpu_custom_call.1} parent=39 // pred_check
          %p304 = pneg %p64
        $region42: #{tpu_custom_call.1} parent=39 // pred_check_branch
          %306 = sbr.rel (%p304) target = $region44
        $region43: #{tpu_custom_call.1} parent=39 // pred_region
          %307 = dma.done %s300, 64
        $region44: #{tpu_custom_call.1} parent=39 // pred_fallthru
          _
        // Predicated region
        $region45: #{tpu_custom_call.1} parent=39 // pred_check
          %p308 = pneg %p127
        $region46: #{tpu_custom_call.1} parent=39 // pred_check_branch
          %310 = sbr.rel (%p308) target = $region48
        $region47: #{tpu_custom_call.1} parent=39 // pred_region
          %311 = dma.done [#allocation6], 256
        $region48: #{tpu_custom_call.1} parent=39 // pred_fallthru
          _
        %s312 = sand.u32 %s51, 1
        %s313 = scalar_lea.sflag [#allocation3], %s312
        %s314 = sand.u32 %s51, 1
        %s315 = smul.addr %s314, 4
        %s316 = scalar_lea.vmem [#allocation2], %s315
        %p317 = pneg %p64
        %p318 = pneg %p61
        %p319 = pneg %p85
        %p320 = pneg %p82
        %p321 = pneg %p106
        %p322 = pneg %p103
        %p323 = pneg %p127
        %p324 = pneg %p124
        %p325 = pneg %p148
        %p326 = pneg %p145
        %p327 = pneg %p176
        %p328 = pneg %p173
        %s329 = sand.u32 %s163, 1
        %s330 = scalar_lea.sflag [#allocation4], %s329
        %s331 = sand.u32 %s163, 1
        %s332 = smul.addr %s331, 16
        %s333 = scalar_lea.vmem [#allocation7], %s332
        %p334 = pneg %p204
        %p335 = pneg %p201
        %s336 = sand.u32 %s29, 1
        %s337 = scalar_lea.sflag [#allocation9], %s336
        %s338 = sand.u32 %s191, 1
        %s339 = smul.addr %s338, 16
        %s340 = scalar_lea.vmem [#allocation8], %s339
        %p341 = pneg %p232
        %p342 = pneg %p229
        %s343 = sand.u32 %s29, 1
        %s344 = scalar_lea.sflag [#allocation9], %s343
        %s345 = sand.u32 %s219, 1
        %s346 = smul.addr %s345, 16
        %s347 = scalar_lea.vmem [#allocation10], %s346
        %v349 = vld [vmem:[%s303] sm:$0xf]
        %v350 = vld [vmem:[%s1] sm:$0x1]
        %v351 = vld [vmem:[%s2] sm:$0x1]
        %v352 = vunpack.c.l.bf16 %v349
        %vm353 = vcmask 261120
        %v354 = vsel %vm353, %v352, 0.0
        %355 = vadd.xlane.f32.xlu0 %v354
        %v356 = vpop.xlane.xlu0 %355
        %v357 = vrcp.pop 32.0
        %v358 = vmul.f32 %v356, %v357
        %v359 = vsub.f32 %v352, %v358
        %v360 = vmul.f32 %v359, %v359
        %v361 = vsel %vm353, %v360, 0.0
        %362 = vadd.xlane.f32.xlu0 %v361
        %v363 = vpop.xlane.xlu0 %362
        %v364 = vmul.f32 %v363, %v357
        %v365 = vadd.f32 %v364, 1e-05
        %v366 = vrsqrt.pop %v365
        %v367 = vmul.f32 %v359, %v366
        %v369 = vlaneseq
        %v370 = vshrl.u32 %v369, 7
        %v371 = vsub.s32 0, %v370
        %v372 = vrot.slane %v350, %v371
        %v374 = vmul.f32 %v367, %v372
        %v376 = vlaneseq
        %v377 = vshrl.u32 %v376, 7
        %v378 = vsub.s32 0, %v377
        %v379 = vrot.slane %v351, %v378
        %v381 = vadd.f32 %v374, %v379
        %v382 = vld [vmem:[#allocation5] sm:$0xf]
        %v383 = vld [vmem:[#allocation5 + $0x4] sm:$0xf]
        %v384 = vld [vmem:[#allocation5 + $0x8] sm:$0xf]
        %v385 = vld [vmem:[#allocation5 + $0xc] sm:$0xf]
        %v386 = vpack.c.bf16 %v381, %v381
        %v387 = vld [vmem:[%s4] sm:$0x1]
        %v389 = vlaneseq
        %v390 = vshrl.u32 %v389, 7
        %v391 = vsub.s32 0, %v390
        %v392 = vrot.slane %v387, %v391
        %v398 = vunpack.c.l.b16 %v382
        %v399 = vunpack.c.l.b16 %v383
        %v400 = vunpack.c.l.b16 %v384
        %v401 = vunpack.c.l.b16 %v385
        %v402 = vpack.c.b16 %v399, %v398
        %v403 = vpack.c.b16 %v401, %v400
        %v407 = vsel %vm353, %v386, 0
        %409 = vmatprep.subr.bf16.mxu0 0
        %410 = vmatpush1.bf16.msra.mxu0 0
        %411 = vmatprep.subr.bf16.mxu0 0
        %412 = vmatpush1.bf16.msra.mxu0 0
        %413 = vmatprep.subr.bf16.mxu0 0
        %414 = vmatpush1.bf16.msra.mxu0 0
        %415 = vmatprep.subr.bf16.mxu0 0
        %416 = vmatpush1.bf16.msra.mxu0 0
        %417 = vmatprep.subr.bf16.mxu0 0
        %418 = vmatpush1.bf16.msra.mxu0 0
        %419 = vmatprep.subr.bf16.mxu0 0
        %420 = vmatpush1.bf16.msra.mxu0 0
        %421 = vmatprep.subr.bf16.mxu0 0
        %422 = vmatpush1.bf16.msra.mxu0 %v403
        %423 = vmatprep.subr.bf16.mxu0 0
        %424 = vmatpush1.bf16.msra.mxu0 %v402
        %425 = vmatprep.subr.bf16.mxu0 0
        %426 = vmatpush2.bf16.msra.mxu0 0
        %427 = vmatprep.subr.bf16.mxu0 0
        %428 = vmatpush2.bf16.msra.mxu0 0
        %429 = vmatprep.subr.bf16.mxu0 0
        %430 = vmatpush2.bf16.msra.mxu0 0
        %431 = vmatprep.subr.bf16.mxu0 0
        %432 = vmatpush2.bf16.msra.mxu0 0
        %433 = vmatprep.subr.bf16.mxu0 0
        %434 = vmatpush2.bf16.msra.mxu0 0
        %435 = vmatprep.subr.bf16.mxu0 0
        %436 = vmatpush2.bf16.msra.mxu0 0
        %437 = vmatprep.subr.bf16.mxu0 0
        %438 = vmatpush2.bf16.msra.mxu0 0
        %439 = vmatprep.subr.bf16.mxu0 0
        %440 = vmatpush2.bf16.msra.mxu0 0
        %441 = vmatprep.mubr.bf16.mxu0 0
        %442 = vmatmul.mubr.bf16.gmra.mxu0 %v407
        %v443 = vpop.f32.mrf.mxu0
        %v444 = vadd.f32 %v392, %v443
        %v445 = vpop.f32.mrf.mxu0
        %v446 = vpop.f32.mrf.mxu0
        %v447 = vpop.f32.mrf.mxu0
        %448 = vdwg.mxu0
        %v449 = vpack.c.bf16 %v444, %v444
        %451 = vrot.lane.b32.xlu0 %v449, 120
        %v452 = vpop.permute.xlu0 %451
        %454 = vrot.lane.b32.xlu0 %v449, 112
        %v455 = vpop.permute.xlu0 %454
        %457 = vrot.lane.b32.xlu0 %v449, 104
        %v458 = vpop.permute.xlu0 %457
        %vm460 = vcmask 60416
        %461 = vst.msk [vmem:[%s333] sm:$0xf] %vm460, %v449
        %462 = vst.msk [vmem:[%s333 + $0x4] sm:$0xf] %vm460, %v452
        %463 = vst.msk [vmem:[%s333 + $0x8] sm:$0xf] %vm460, %v455
        %464 = vst.msk [vmem:[%s333 + $0xc] sm:$0xf] %vm460, %v458
        %v465 = vunpack.c.l.b16 %v449
        %v466 = vunpack.c.l.b16 %v452
        %v467 = vunpack.c.l.b16 %v455
        %v468 = vunpack.c.l.b16 %v458
        %v469 = vpack.c.b16 %v465, %v465
        %v470 = vpack.c.b16 %v466, %v466
        %v471 = vpack.c.b16 %v467, %v467
        %v472 = vpack.c.b16 %v468, %v468
        %473 = vrot.lane.b32.xlu0 %v469, 96
        %v474 = vpop.permute.xlu0 %473
        %475 = vrot.lane.b32.xlu0 %v470, 96
        %v476 = vpop.permute.xlu0 %475
        %477 = vrot.lane.b32.xlu0 %v471, 96
        %v478 = vpop.permute.xlu0 %477
        %479 = vrot.lane.b32.xlu0 %v472, 96
        %v480 = vpop.permute.xlu0 %479
        %485 = vst.msk [vmem:[%s340] sm:$0xf] %vm460, %v474
        %486 = vst.msk [vmem:[%s340 + $0x4] sm:$0xf] %vm460, %v476
        %487 = vst.msk [vmem:[%s340 + $0x8] sm:$0xf] %vm460, %v478
        %488 = vst.msk [vmem:[%s340 + $0xc] sm:$0xf] %vm460, %v480
        %489 = vrot.lane.b32.xlu0 %v469, 64
        %v490 = vpop.permute.xlu0 %489
        %491 = vrot.lane.b32.xlu0 %v470, 64
        %v492 = vpop.permute.xlu0 %491
        %493 = vrot.lane.b32.xlu0 %v471, 64
        %v494 = vpop.permute.xlu0 %493
        %495 = vrot.lane.b32.xlu0 %v472, 64
        %v496 = vpop.permute.xlu0 %495
        %501 = vst.msk [vmem:[%s347] sm:$0xf] %vm460, %v490
        %502 = vst.msk [vmem:[%s347 + $0x4] sm:$0xf] %vm460, %v492
        %503 = vst.msk [vmem:[%s347 + $0x8] sm:$0xf] %vm460, %v494
        %504 = vst.msk [vmem:[%s347 + $0xc] sm:$0xf] %vm460, %v496
        %s505 = sand.u32 %s163, 1
        %s506 = scalar_lea.sflag [#allocation4], %s505
        %s507 = sand.u32 %s163, 1
        %s508 = smul.addr %s507, 16
        %s509 = scalar_lea.vmem [#allocation7], %s508
        %s510 = sand.u32 %s29, 1
        %s511 = scalar_lea.sflag [#allocation9], %s510
        %s512 = sand.u32 %s191, 1
        %s513 = smul.addr %s512, 16
        %s514 = scalar_lea.vmem [#allocation8], %s513
        %s515 = sand.u32 %s29, 1
        %s516 = scalar_lea.sflag [#allocation9], %s515
        %s517 = sand.u32 %s219, 1
        %s518 = smul.addr %s517, 16
        %s519 = scalar_lea.vmem [#allocation10], %s518
        // Predicated region
        $region49: #{tpu_custom_call.1} parent=39 // pred_check
          %p520 = pneg %p173
        $region50: #{tpu_custom_call.1} parent=39 // pred_check_branch
          %522 = sbr.rel (%p520) target = $region52
        $region51: #{tpu_custom_call.1} parent=39 // pred_region
          %s524 = ssub.s32 256, 256
          %525 = vsyncadd %s506, %s524
          %s526 = smul.addr %s33, 4
          %s527 = sadd.s32 %s34, %s526
          %s528 = smul.addr %s527, 64
          %s529 = scalar_lea.hbm %s5, %s528
          %s530 = sshll.u32 %s509, 4
          %s531 = int_to_ptr.vmem [resolvable:$true] %s530
          %536 = dma.vmem_to_hbm [thread:$0]  %s531, 256, %s529, %s506, 64, 64, 4
        $region52: #{tpu_custom_call.1} parent=39 // pred_fallthru
          _
        // Predicated region
        $region53: #{tpu_custom_call.1} parent=39 // pred_check
          %p537 = pneg %p201
        $region54: #{tpu_custom_call.1} parent=39 // pred_check_branch
          %539 = sbr.rel (%p537) target = $region56
        $region55: #{tpu_custom_call.1} parent=39 // pred_region
          %s541 = ssub.s32 256, 256
          %542 = vsyncadd %s511, %s541
          %s543 = smul.addr %s33, 4
          %s544 = sadd.s32 %s34, %s543
          %s545 = smul.addr %s544, 64
          %s546 = scalar_lea.hbm %s6, %s545
          %s547 = sshll.u32 %s514, 4
          %s548 = int_to_ptr.vmem [resolvable:$true] %s547
          %553 = dma.vmem_to_hbm [thread:$0]  %s548, 256, %s546, %s511, 64, 64, 4
        $region56: #{tpu_custom_call.1} parent=39 // pred_fallthru
          _
        // Predicated region
        $region57: #{tpu_custom_call.1} parent=39 // pred_check
          %p554 = pneg %p229
        $region58: #{tpu_custom_call.1} parent=39 // pred_check_branch
          %556 = sbr.rel (%p554) target = $region60
        $region59: #{tpu_custom_call.1} parent=39 // pred_region
          %s558 = ssub.s32 256, 256
          %559 = vsyncadd %s516, %s558
          %s560 = smul.addr %s33, 4
          %s561 = sadd.s32 %s34, %s560
          %s562 = smul.addr %s561, 64
          %s563 = scalar_lea.hbm %s7, %s562
          %s564 = sshll.u32 %s519, 4
          %s565 = int_to_ptr.vmem [resolvable:$true] %s564
          %570 = dma.vmem_to_hbm [thread:$0]  %s565, 256, %s563, %s516, 64, 64, 4
        $region60: #{tpu_custom_call.1} parent=39 // pred_fallthru
          _
      $region40: #{tpu_custom_call.1} parent=5 // pred_fallthru
        _
      %p571 = scmp.le.s32.totalorder 2, %s24
      // Predicated region
      $region61: #{tpu_custom_call.1} parent=5 // pred_check
        %p572 = pneg %p571
      $region62: #{tpu_custom_call.1} parent=5 // pred_check_branch
        %574 = sbr.rel (%p572) target = $region64
      $region63: #{tpu_custom_call.1} parent=5 // pred_region
        %s575 = ssub.s32 %s24, 2
        // Predicated region
        $region65: #{tpu_custom_call.1} parent=63 // pred_check
          %p576 = pneg %p179
        $region66: #{tpu_custom_call.1} parent=63 // pred_check_branch
          %578 = sbr.rel (%p576) target = $region68
        $region67: #{tpu_custom_call.1} parent=63 // pred_region
          %s579 = sand.u32 %s164, 1
          %s580 = scalar_lea.sflag [#allocation4], %s579
          %s581 = sand.u32 %s164, 1
          %s582 = smul.addr %s581, 16
          %s583 = scalar_lea.vmem [#allocation7], %s582
          %584 = dma.done %s580, 256
        $region68: #{tpu_custom_call.1} parent=63 // pred_fallthru
          _
        // Predicated region
        $region69: #{tpu_custom_call.1} parent=63 // pred_check
          %p585 = pneg %p207
        $region70: #{tpu_custom_call.1} parent=63 // pred_check_branch
          %587 = sbr.rel (%p585) target = $region72
        $region71: #{tpu_custom_call.1} parent=63 // pred_region
          %s588 = sand.u32 %s30, 1
          %s589 = scalar_lea.sflag [#allocation9], %s588
          %s590 = sand.u32 %s192, 1
          %s591 = smul.addr %s590, 16
          %s592 = scalar_lea.vmem [#allocation8], %s591
          %593 = dma.done %s589, 256
        $region72: #{tpu_custom_call.1} parent=63 // pred_fallthru
          _
        // Predicated region
        $region73: #{tpu_custom_call.1} parent=63 // pred_check
          %p594 = pneg %p235
        $region74: #{tpu_custom_call.1} parent=63 // pred_check_branch
          %596 = sbr.rel (%p594) target = $region76
        $region75: #{tpu_custom_call.1} parent=63 // pred_region
          %s597 = sand.u32 %s30, 1
          %s598 = scalar_lea.sflag [#allocation9], %s597
          %s599 = sand.u32 %s220, 1
          %s600 = smul.addr %s599, 16
          %s601 = scalar_lea.vmem [#allocation10], %s600
          %602 = dma.done %s598, 256
        $region76: #{tpu_custom_call.1} parent=63 // pred_fallthru
          _
      $region64: #{tpu_custom_call.1} parent=5 // pred_fallthru
        _
    $region6: #{tpu_custom_call.1} parent=1 // loop_footer
      %s28 = sadd.s32 1, %s24
    $region7: #{tpu_custom_call.1} parent=1 // loop_footer_branch
      %23 = sbr.rel target = $region3
    $region8: #{tpu_custom_call.1} parent=1 // loop_exit
      _
    %603 = vsyncpa [#allocation3], 1
    %s604 = scalar_lea.sflag [#allocation3], 1
    %605 = vsyncpa %s604, 1
    %606 = vsyncpa [#allocation6], 1
    %607 = vsyncpa [#allocation4], 1
    %s608 = scalar_lea.sflag [#allocation4], 1
    %609 = vsyncpa %s608, 1
    %610 = vsyncpa [#allocation9], 1
    %s611 = scalar_lea.sflag [#allocation9], 1
    %612 = vsyncpa %s611, 1

</llo_original>
